<compile_context>
chip_gen: v7x
topology: tpu7x:2x2x1
jax: 0.10.0
libtpu: 0.0.40
codegen_flags: <defaults>
</compile_context>

<pallas_src>
import jax
import jax.numpy as jnp
from jax.experimental import pallas as pl
from jax.experimental.pallas import tpu as pltpu

B = 2       # batch
C = 16      # channels
H = 16      # height
W = 16      # width
EPS = 1e-5  # nn.BatchNorm2d default eps


def _make_bn_kernel(block_c, inv_m, eps):
    """Builds the per-channel-block training-mode BatchNorm kernel.

    Refs seen by the kernel:
      x_ref:     (B, block_c, HW)  activations, HW lane-dense
      gamma_ref: (1, C, 1)         full affine scale (grid-invariant)
      beta_ref:  (1, C, 1)         full affine shift (grid-invariant)
      o_ref:     (B, block_c, HW)
    """

    def kernel(x_ref, gamma_ref, beta_ref, o_ref):
        i = pl.program_id(0)
        start = pl.multiple_of(i * block_c, block_c)

        # Per-block affine params, sliced from the grid-invariant full tiles.
        g = gamma_ref[:, pl.ds(start, block_c), :].astype(jnp.float32)  # (1,bc,1)
        bta = beta_ref[:, pl.ds(start, block_c), :].astype(jnp.float32)

        x = x_ref[...].astype(jnp.float32)                              # (B,bc,HW)

        # Batch statistics over (B, H*W) per channel.  Lane-axis reduce first
        # (XLU), then the tiny batch axis.  inv_m is the true 1/(B*H*W).
        mean = jnp.sum(jnp.sum(x, axis=2, keepdims=True),
                       axis=0, keepdims=True) * inv_m                   # (1,bc,1)
        xc = x - mean
        var = jnp.sum(jnp.sum(xc * xc, axis=2, keepdims=True),
                      axis=0, keepdims=True) * inv_m                    # biased

        # Fused per-channel scale/shift; rsqrt runs on the EUP slot.
        scale = g * jax.lax.rsqrt(var + eps)
        o_ref[...] = (xc * scale + bta).astype(o_ref.dtype)

    return kernel


def dual_bn2d(x, params, flag=False, block_c=8, eps=EPS):
    """x: (B, C, H, W) -> (B, C, H, W).  Uses bn_ssl params if flag else bn."""
    b, c, h, w = x.shape
    gamma, beta = params["bn_ssl"] if flag else params["bn"]
    hw = h * w
    m = b * hw
    assert c % block_c == 0, "channel count must be a multiple of block_c"

    # Free contiguous reshape; no HBM transpose on either side.
    x3 = x.reshape(b, c, hw)
    gamma3 = gamma.reshape(1, c, 1).astype(jnp.float32)
    beta3 = beta.reshape(1, c, 1).astype(jnp.float32)

    kernel = _make_bn_kernel(block_c, 1.0 / m, eps)

    y3 = pl.pallas_call(
        kernel,
        out_shape=jax.ShapeDtypeStruct((b, c, hw), x.dtype),
        grid=(c // block_c,),
        in_specs=[
            pl.BlockSpec((b, block_c, hw), lambda i: (0, i, 0)),
            pl.BlockSpec((1, c, 1), lambda i: (0, 0, 0)),   # grid-invariant
            pl.BlockSpec((1, c, 1), lambda i: (0, 0, 0)),   # grid-invariant
        ],
        out_specs=pl.BlockSpec((b, block_c, hw), lambda i: (0, i, 0)),
        compiler_params=pltpu.CompilerParams(
            dimension_semantics=("parallel",)),
        cost_estimate=pl.CostEstimate(
            flops=5 * c * m,
            transcendentals=c,
            bytes_accessed=2 * c * m * x.dtype.itemsize + 2 * c * 4),
    )(x3, gamma3, beta3)

    return y3.reshape(b, c, h, w)


def init_params(key, c=C):
    k = jax.random.split(key, 4)
    params = {}
    # Two independent affine parameter sets (bn and bn_ssl).
    params["bn"] = (
        1.0 + 0.1 * jax.random.normal(k[0], (c,), jnp.float32),   # gamma
        0.1 * jax.random.normal(k[1], (c,), jnp.float32),          # beta
    )
    params["bn_ssl"] = (
        1.0 + 0.1 * jax.random.normal(k[2], (c,), jnp.float32),
        0.1 * jax.random.normal(k[3], (c,), jnp.float32),
    )
    return params


def reference_forward(x, params, flag=False):
    """Pure-JAX reference: training-mode BatchNorm2d with selected params."""
    gamma, beta = params["bn_ssl"] if flag else params["bn"]
    mean = jnp.mean(x, axis=(0, 2, 3), keepdims=True)
    var = jnp.var(x, axis=(0, 2, 3), keepdims=True)     # biased variance
    xn = (x - mean) * jax.lax.rsqrt(var + EPS)
    return xn * gamma.reshape(1, -1, 1, 1) + beta.reshape(1, -1, 1, 1)


if __name__ == "__main__":
    key = jax.random.PRNGKey(0)
    kx, kp = jax.random.split(key)
    x = jax.random.normal(kx, (B, C, H, W), jnp.float32)
    params = init_params(kp)

    ok = True
    for flag in (False, True):
        out = jax.block_until_ready(dual_bn2d(x, params, flag=flag))
        assert out.shape == (B, C, H, W), out.shape
        ref = jax.block_until_ready(reference_forward(x, params, flag=flag))
        err = float(jnp.max(jnp.abs(out - ref)))
        if not jnp.allclose(out, ref, rtol=1e-4, atol=1e-4):
            ok = False
            print("flag=%s max abs diff: %e" % (flag, err))

    if ok:
        print("KERNEL_OK")
</pallas_src>

<mosaic_0001>
module attributes {stable_mosaic.version = 11 : i64} {
  func.func @kernel(%arg0: i32, %arg1: memref<2x8x256xf32, #tpu.memory_space<vmem>>, %arg2: memref<1x16x1xf32, #tpu.memory_space<vmem>>, %arg3: memref<1x16x1xf32, #tpu.memory_space<vmem>>, %arg4: memref<2x8x256xf32, #tpu.memory_space<vmem>>) attributes {dimension_semantics = [#tpu.dimension_semantics<parallel>], iteration_bounds = array<i64: 2>, scalar_prefetch = 0 : i64, scratch_operands = 0 : i64, tpu.core_type = #tpu.core_type<tc>, window_params = [{transform_indices = @transform_0, window_bounds = array<i64: 2, 8, 256>}, {pipeline_mode = #tpu.pipeline_mode<synchronous>, transform_indices = @transform_1, window_bounds = array<i64: 1, 16, 1>}, {pipeline_mode = #tpu.pipeline_mode<synchronous>, transform_indices = @transform_2, window_bounds = array<i64: 1, 16, 1>}, {transform_indices = @transform_3, window_bounds = array<i64: 2, 8, 256>}]} {
    %c8_i32 = arith.constant 8 : i32
    %0 = arith.muli %arg0, %c8_i32 : i32
    %1 = tpu.assume_multiple %0, 8 : i32
    %c0 = arith.constant 0 : index
    %2 = arith.index_cast %1 : i32 to index
    %c0_0 = arith.constant 0 : index
    %3 = vector.load %arg2[%c0, %2, %c0_0] : memref<1x16x1xf32, #tpu.memory_space<vmem>>, vector<1x8x1xf32>
    %c0_1 = arith.constant 0 : index
    %4 = arith.index_cast %1 : i32 to index
    %c0_2 = arith.constant 0 : index
    %5 = vector.load %arg3[%c0_1, %4, %c0_2] : memref<1x16x1xf32, #tpu.memory_space<vmem>>, vector<1x8x1xf32>
    %c0_3 = arith.constant 0 : index
    %c0_4 = arith.constant 0 : index
    %c0_5 = arith.constant 0 : index
    %6 = vector.load %arg1[%c0_3, %c0_4, %c0_5] : memref<2x8x256xf32, #tpu.memory_space<vmem>>, vector<2x8x256xf32>
    %cst = arith.constant dense<0.000000e+00> : vector<2x8xf32>
    %7 = vector.multi_reduction <add>, %6, %cst [2] : vector<2x8x256xf32> to vector<2x8xf32>
    %8 = vector.shape_cast %7 : vector<2x8xf32> to vector<2x8x1xf32>
    %cst_6 = arith.constant dense<0.000000e+00> : vector<8x1xf32>
    %9 = vector.multi_reduction <add>, %8, %cst_6 [0] : vector<2x8x1xf32> to vector<8x1xf32>
    %10 = vector.shape_cast %9 : vector<8x1xf32> to vector<1x8x1xf32>
    %cst_7 = arith.constant 0.001953125 : f32
    %11 = vector.broadcast %cst_7 : f32 to vector<1x8x1xf32>
    %12 = arith.mulf %10, %11 : vector<1x8x1xf32>
    %13 = vector.broadcast %12 : vector<1x8x1xf32> to vector<2x8x256xf32>
    %14 = arith.subf %6, %13 : vector<2x8x256xf32>
    %15 = arith.mulf %14, %14 : vector<2x8x256xf32>
    %cst_8 = arith.constant dense<0.000000e+00> : vector<2x8xf32>
    %16 = vector.multi_reduction <add>, %15, %cst_8 [2] : vector<2x8x256xf32> to vector<2x8xf32>
    %17 = vector.shape_cast %16 : vector<2x8xf32> to vector<2x8x1xf32>
    %cst_9 = arith.constant dense<0.000000e+00> : vector<8x1xf32>
    %18 = vector.multi_reduction <add>, %17, %cst_9 [0] : vector<2x8x1xf32> to vector<8x1xf32>
    %19 = vector.shape_cast %18 : vector<8x1xf32> to vector<1x8x1xf32>
    %cst_10 = arith.constant 0.001953125 : f32
    %20 = vector.broadcast %cst_10 : f32 to vector<1x8x1xf32>
    %21 = arith.mulf %19, %20 : vector<1x8x1xf32>
    %cst_11 = arith.constant 9.99999974E-6 : f32
    %22 = vector.broadcast %cst_11 : f32 to vector<1x8x1xf32>
    %23 = arith.addf %21, %22 : vector<1x8x1xf32>
    %24 = math.rsqrt %23 : vector<1x8x1xf32>
    %25 = arith.mulf %3, %24 : vector<1x8x1xf32>
    %26 = vector.broadcast %25 : vector<1x8x1xf32> to vector<2x8x256xf32>
    %27 = arith.mulf %14, %26 : vector<2x8x256xf32>
    %28 = vector.broadcast %5 : vector<1x8x1xf32> to vector<2x8x256xf32>
    %29 = arith.addf %27, %28 : vector<2x8x256xf32>
    %c0_12 = arith.constant 0 : index
    %c0_13 = arith.constant 0 : index
    %c0_14 = arith.constant 0 : index
    %30 = vector.load %arg4[%c0_12, %c0_13, %c0_14] : memref<2x8x256xf32, #tpu.memory_space<vmem>>, vector<2x8x256xf32>
    tpu.vector_store %arg4[%c0_12, %c0_13, %c0_14], %29 {strides = array<i32>} : memref<2x8x256xf32, #tpu.memory_space<vmem>>, vector<2x8x256xf32>,
    return
  }
  func.func @transform_0(%arg0: i32) -> (i32, i32, i32) {
    %c0_i32 = arith.constant 0 : i32
    %c0_i32_0 = arith.constant 0 : i32
    %c0_i32_1 = arith.constant 0 : i32
    return %c0_i32, %arg0, %c0_i32_0 : i32, i32, i32
  }
  func.func @transform_1(%arg0: i32) -> (i32, i32, i32) {
    %c0_i32 = arith.constant 0 : i32
    %c0_i32_0 = arith.constant 0 : i32
    %c0_i32_1 = arith.constant 0 : i32
    %c0_i32_2 = arith.constant 0 : i32
    return %c0_i32, %c0_i32_0, %c0_i32_1 : i32, i32, i32
  }
  func.func @transform_2(%arg0: i32) -> (i32, i32, i32) {
    %c0_i32 = arith.constant 0 : i32
    %c0_i32_0 = arith.constant 0 : i32
    %c0_i32_1 = arith.constant 0 : i32
    %c0_i32_2 = arith.constant 0 : i32
    return %c0_i32, %c0_i32_0, %c0_i32_1 : i32, i32, i32
  }
  func.func @transform_3(%arg0: i32) -> (i32, i32, i32) {
    %c0_i32 = arith.constant 0 : i32
    %c0_i32_0 = arith.constant 0 : i32
    %c0_i32_1 = arith.constant 0 : i32
    return %c0_i32, %arg0, %c0_i32_0 : i32, i32, i32
  }
}

</mosaic_0001>

<llo_original>
// kernel: tpu_custom_call.1
$region0: #{tpu_custom_call.1}
  #allocation0 [shape = 'u32[]', space=smem, size = 0x4, offset = 0x4, fixed_abs, tag = 'smem constant byte address 0x4 - core index']
  #allocation1 [shape = 'u32[144,128]{1,0:T(1,128)}', space=vmem, size = 0x12000, scoped, tag = 'internal scratch']
  %s0 = inlined_call_operand.hbm [shape: f32[2,16,256], index: 0, kind: input, shape index: {}]
  %s1 = inlined_call_operand.vmem [shape: f32[1,16,1], index: 1, kind: input, shape index: {}]
  %s2 = inlined_call_operand.vmem [shape: f32[1,16,1], index: 2, kind: input, shape index: {}]
  %s3 = inlined_call_operand.hbm [shape: f32[2,16,256], index: 3, kind: output, shape index: {}]
  %s4 = sld [smem:[#allocation0]]
  $region49: #{tpu_custom_call.1} parent=0
    _
  %s6 = ssub.s32 1, %s4
  %s7 = scalar_select 0, %s6, %s4
  $region1: #{tpu_custom_call.1} parent=0
    #allocation2 [shape = 'u8[32768]{0}', space=vmem, size = 0x8000, scoped, tag = 'input window, operand 0']
    #allocation3 [shape = 's32[2]{0}', space=sflag, size = 0x8, scoped, tag = 'scoped memory for tpu_custom_call.1']
    #allocation4 [shape = 's32[2]{0}', space=sflag, size = 0x8, scoped, tag = 'scoped memory for tpu_custom_call.1']
    #allocation5 [shape = 'u8[32768]{0}', space=vmem, size = 0x8000, scoped, tag = 'output window, operand 0']
    %8 = vsyncpa [#allocation3], 0
    %s9 = scalar_lea.sflag [#allocation3], 1
    %10 = vsyncpa %s9, 0
    %11 = vsyncpa [#allocation4], 0
    %s12 = scalar_lea.sflag [#allocation4], 1
    %13 = vsyncpa %s12, 0
    loop: start=0, step=1, limit=4
    $region2: #{tpu_custom_call.1} parent=1 // loop_pre_header
      _
    $region3: #{tpu_custom_call.1} parent=1 // loop_header
      %s15 = sphi 0, %s19
      %p16 = scmp.ge.s32.totalorder %s15, 4
      %s25 = sphi 0, %s27
      %s28 = sphi 0, %s25
      %s29 = sphi 0, %s28
      %s45 = sphi 0, %s29
      %s49 = sphi 0, %s49
      %s51 = sphi 0, %s49
      %s52 = sphi 0, %s51
      %s66 = sphi 0, %s52
      %s70 = sphi 0, %s70
      %s72 = sphi 0, %s70
      %s73 = sphi 0, %s72
      %s87 = sphi 0, %s73
      %s93 = sphi 0, %s95
      %s96 = sphi 0, %s93
      %s97 = sphi 0, %s96
      %s113 = sphi 0, %s97
    $region4: #{tpu_custom_call.1} parent=1 // loop_header_branch
      %18 = sbr.rel (%p16) target = $region8
    $region5: #{tpu_custom_call.1} parent=1 // loop_body
      %s20 = ssub.s32 %s15, 1
      %s21 = ssub.s32 %s15, 2
      %s22 = sadd.s32 %s15, 1
      %s23 = ssub.s32 %s15, %s22
      %p24 = scmp.eq.s32.totalorder %s23, 0
      %s26 = sadd.s32 %s25, 1
      %s27 = scalar_select %p24, %s25, %s26
      %p30 = pneg %p24
      %p31 = scmp.eq.s32.totalorder %s15, 1
      %p32 = por %p30, %p31
      %p33 = scmp.ne.s32.totalorder %s25, %s28
      %p34 = scmp.eq.s32.totalorder %s15, 0
      %p35 = por %p33, %p34
      %p36 = scmp.ne.s32.totalorder %s25, %s28
      %p37 = scmp.eq.s32.totalorder %s20, 1
      %p38 = por %p36, %p37
      %p39 = scmp.ne.s32.totalorder %s28, %s29
      %p40 = scmp.eq.s32.totalorder %s20, 0
      %p41 = por %p39, %p40
      %p42 = scmp.ne.s32.totalorder %s28, %s29
      %p43 = scmp.eq.s32.totalorder %s21, 1
      %p44 = por %p42, %p43
      %p46 = scmp.ne.s32.totalorder %s29, %s45
      %p47 = scmp.eq.s32.totalorder %s21, 0
      %p48 = por %p46, %p47
      %s50 = sadd.s32 %s49, 1
      %p53 = scmp.eq.s32.totalorder %s15, 1
      %p54 = scmp.ne.s32.totalorder %s49, %s51
      %p55 = scmp.eq.s32.totalorder %s15, 0
      %p56 = por %p54, %p55
      %p57 = scmp.ne.s32.totalorder %s49, %s51
      %p58 = scmp.eq.s32.totalorder %s20, 1
      %p59 = por %p57, %p58
      %p60 = scmp.ne.s32.totalorder %s51, %s52
      %p61 = scmp.eq.s32.totalorder %s20, 0
      %p62 = por %p60, %p61
      %p63 = scmp.ne.s32.totalorder %s51, %s52
      %p64 = scmp.eq.s32.totalorder %s21, 1
      %p65 = por %p63, %p64
      %p67 = scmp.ne.s32.totalorder %s52, %s66
      %p68 = scmp.eq.s32.totalorder %s21, 0
      %p69 = por %p67, %p68
      %s71 = sadd.s32 %s70, 1
      %p74 = scmp.eq.s32.totalorder %s15, 1
      %p75 = scmp.ne.s32.totalorder %s70, %s72
      %p76 = scmp.eq.s32.totalorder %s15, 0
      %p77 = por %p75, %p76
      %p78 = scmp.ne.s32.totalorder %s70, %s72
      %p79 = scmp.eq.s32.totalorder %s20, 1
      %p80 = por %p78, %p79
      %p81 = scmp.ne.s32.totalorder %s72, %s73
      %p82 = scmp.eq.s32.totalorder %s20, 0
      %p83 = por %p81, %p82
      %p84 = scmp.ne.s32.totalorder %s72, %s73
      %p85 = scmp.eq.s32.totalorder %s21, 1
      %p86 = por %p84, %p85
      %p88 = scmp.ne.s32.totalorder %s73, %s87
      %p89 = scmp.eq.s32.totalorder %s21, 0
      %p90 = por %p88, %p89
      %s91 = ssub.s32 %s15, %s22
      %p92 = scmp.eq.s32.totalorder %s91, 0
      %s94 = sadd.s32 %s93, 1
      %s95 = scalar_select %p92, %s93, %s94
      %p98 = pneg %p92
      %p99 = scmp.eq.s32.totalorder %s15, 1
      %p100 = por %p98, %p99
      %p101 = scmp.ne.s32.totalorder %s93, %s96
      %p102 = scmp.eq.s32.totalorder %s15, 0
      %p103 = por %p101, %p102
      %p104 = scmp.ne.s32.totalorder %s93, %s96
      %p105 = scmp.eq.s32.totalorder %s20, 1
      %p106 = por %p104, %p105
      %p107 = scmp.ne.s32.totalorder %s96, %s97
      %p108 = scmp.eq.s32.totalorder %s20, 0
      %p109 = por %p107, %p108
      %p110 = scmp.ne.s32.totalorder %s96, %s97
      %p111 = scmp.eq.s32.totalorder %s21, 1
      %p112 = por %p110, %p111
      %p114 = scmp.ne.s32.totalorder %s97, %s113
      %p115 = scmp.eq.s32.totalorder %s21, 0
      %p116 = por %p114, %p115
      %p117 = scmp.le.s32.totalorder 1, %s15
      %p118 = scmp.lt.s32.totalorder %s15, 3
      %p119 = pnand %p117, %p118
      %p120 = pneg %p119
      // Predicated region
      $region9: #{tpu_custom_call.1} parent=5 // pred_check
        _
      $region10: #{tpu_custom_call.1} parent=5 // pred_check_branch
        %122 = sbr.rel (%p119) target = $region12
      $region11: #{tpu_custom_call.1} parent=5 // pred_region
        %s123 = ssub.s32 %s15, 1
        // Predicated region
        $region13: #{tpu_custom_call.1} parent=11 // pred_check
          %p124 = pneg %p62
        $region14: #{tpu_custom_call.1} parent=11 // pred_check_branch
          %126 = sbr.rel (%p124) target = $region16
        $region15: #{tpu_custom_call.1} parent=11 // pred_region
          _
        $region16: #{tpu_custom_call.1} parent=11 // pred_fallthru
          _
        // Predicated region
        $region17: #{tpu_custom_call.1} parent=11 // pred_check
          %p127 = pneg %p83
        $region18: #{tpu_custom_call.1} parent=11 // pred_check_branch
          %129 = sbr.rel (%p127) target = $region20
        $region19: #{tpu_custom_call.1} parent=11 // pred_region
          _
        $region20: #{tpu_custom_call.1} parent=11 // pred_fallthru
          _
      $region12: #{tpu_custom_call.1} parent=5 // pred_fallthru
        _
      %p130 = scmp.lt.s32.totalorder %s15, 2
      // Predicated region
      $region21: #{tpu_custom_call.1} parent=5 // pred_check
        %p131 = pneg %p130
      $region22: #{tpu_custom_call.1} parent=5 // pred_check_branch
        %133 = sbr.rel (%p131) target = $region24
      $region23: #{tpu_custom_call.1} parent=5 // pred_region
        // Predicated region
        $region25: #{tpu_custom_call.1} parent=23 // pred_check
          %p134 = pneg %p35
        $region26: #{tpu_custom_call.1} parent=23 // pred_check_branch
          %136 = sbr.rel (%p134) target = $region28
        $region27: #{tpu_custom_call.1} parent=23 // pred_region
          %s137 = sand.u32 %s25, 1
          %s138 = scalar_lea.sflag [#allocation3], %s137
          %s139 = sand.u32 %s25, 1
          %s140 = smul.addr %s139, 32
          %s141 = scalar_lea.vmem [#allocation2], %s140
          %s143 = ssub.s32 512, 512
          %144 = vsyncadd %s138, %s143
          %s145 = smul.addr %s15, 2
          %s146 = smul.addr %s145, 128
          %s147 = scalar_lea.hbm %s0, %s146
          %s148 = sshll.u32 %s141, 4
          %s149 = int_to_ptr.vmem [resolvable:$true] %s148
          %154 = dma.hbm_to_vmem [thread:$0]  %s147, 512, %s149, %s138, 512, 256, 16
        $region28: #{tpu_custom_call.1} parent=23 // pred_fallthru
          _
      $region24: #{tpu_custom_call.1} parent=5 // pred_fallthru
        _
      %p155 = scmp.le.s32.totalorder 1, %s15
      %p156 = scmp.lt.s32.totalorder %s15, 3
      %p157 = pnand %p155, %p156
      %p158 = pneg %p157
      // Predicated region
      $region29: #{tpu_custom_call.1} parent=5 // pred_check
        _
      $region30: #{tpu_custom_call.1} parent=5 // pred_check_branch
        %160 = sbr.rel (%p157) target = $region32
      $region31: #{tpu_custom_call.1} parent=5 // pred_region
        %s161 = ssub.s32 %s15, 1
        %s162 = sand.u32 %s28, 1
        %s163 = scalar_lea.sflag [#allocation3], %s162
        %s164 = sand.u32 %s28, 1
        %s165 = smul.addr %s164, 32
        %s166 = scalar_lea.vmem [#allocation2], %s165
        // Predicated region
        $region33: #{tpu_custom_call.1} parent=31 // pred_check
          %p167 = pneg %p41
        $region34: #{tpu_custom_call.1} parent=31 // pred_check_branch
          %169 = sbr.rel (%p167) target = $region36
        $region35: #{tpu_custom_call.1} parent=31 // pred_region
          %170 = dma.done %s163, 512
        $region36: #{tpu_custom_call.1} parent=31 // pred_fallthru
          _
        %s171 = sand.u32 %s28, 1
        %s172 = scalar_lea.sflag [#allocation3], %s171
        %s173 = sand.u32 %s28, 1
        %s174 = smul.addr %s173, 32
        %s175 = scalar_lea.vmem [#allocation2], %s174
        %p176 = pneg %p41
        %p177 = pneg %p38
        %p178 = pneg %p62
        %p179 = pneg %p59
        %p180 = pneg %p83
        %p181 = pneg %p80
        %p182 = pneg %p109
        %p183 = pneg %p106
        %s184 = sand.u32 %s96, 1
        %s185 = scalar_lea.sflag [#allocation4], %s184
        %s186 = sand.u32 %s96, 1
        %s187 = smul.addr %s186, 32
        %s188 = scalar_lea.vmem [#allocation5], %s187
        %s189 = smul.u32 %s20, 8
        %s190 = scalar_lea.vmem %s1, %s189
        %v191 = vld [vmem:[%s190] sm:$0xff]
        %s192 = scalar_lea.vmem %s2, %s189
        %v193 = vld [vmem:[%s192] sm:$0xff]
        %v194 = vld [vmem:[%s166] sm:$0xff]
        %v195 = vld [vmem:[%s166 + $0x8] sm:$0xff]
        %v196 = vld [vmem:[%s166 + $0x10] sm:$0xff]
        %v197 = vld [vmem:[%s166 + $0x18] sm:$0xff]
        %v198 = vadd.f32 %v194, %v195
        %199 = vadd.xlane.f32.xlu0 %v198
        %v200 = vpop.xlane.xlu0 %199
        %v201 = vadd.f32 %v196, %v197
        %202 = vadd.xlane.f32.xlu0 %v201
        %v203 = vpop.xlane.xlu0 %202
        %v204 = vadd.f32 %v200, %v203
        %v205 = vmul.f32 %v204, 0.001953125
        %v206 = vsub.f32 %v194, %v205
        %v207 = vsub.f32 %v195, %v205
        %v208 = vsub.f32 %v196, %v205
        %v209 = vsub.f32 %v197, %v205
        %v210 = vmul.f32 %v206, %v206
        %v211 = vmul.f32 %v207, %v207
        %v212 = vmul.f32 %v208, %v208
        %v213 = vmul.f32 %v209, %v209
        %v214 = vadd.f32 %v210, %v211
        %215 = vadd.xlane.f32.xlu0 %v214
        %v216 = vpop.xlane.xlu0 %215
        %v217 = vadd.f32 %v212, %v213
        %218 = vadd.xlane.f32.xlu0 %v217
        %v219 = vpop.xlane.xlu0 %218
        %v220 = vadd.f32 %v216, %v219
        %v221 = vmul.f32 %v220, 0.001953125
        %v222 = vadd.f32 %v221, 1e-05
        %v223 = vrsqrt.pop %v222
        %v224 = vmul.f32 %v191, %v223
        %226 = vset.pattern.permute.xlu0 0
        %227 = vperm.xlu0 %226, %v224
        %v228 = vpop.permute.xlu0 %227
        %v230 = vmul.f32 %v206, %v228
        %v231 = vmul.f32 %v207, %v228
        %v232 = vmul.f32 %v208, %v228
        %v233 = vmul.f32 %v209, %v228
        %235 = vset.pattern.permute.xlu0 0
        %236 = vperm.xlu0 %235, %v193
        %v237 = vpop.permute.xlu0 %236
        %v239 = vadd.f32 %v230, %v237
        %v240 = vadd.f32 %v231, %v237
        %v241 = vadd.f32 %v232, %v237
        %v242 = vadd.f32 %v233, %v237
        %243 = vst [vmem:[%s188] sm:$0xff] %v239
        %244 = vst [vmem:[%s188 + $0x8] sm:$0xff] %v240
        %245 = vst [vmem:[%s188 + $0x10] sm:$0xff] %v241
        %246 = vst [vmem:[%s188 + $0x18] sm:$0xff] %v242
        %s247 = sand.u32 %s96, 1
        %s248 = scalar_lea.sflag [#allocation4], %s247
        %s249 = sand.u32 %s96, 1
        %s250 = smul.addr %s249, 32
        %s251 = scalar_lea.vmem [#allocation5], %s250
        // Predicated region
        $region37: #{tpu_custom_call.1} parent=31 // pred_check
          %p252 = pneg %p106
        $region38: #{tpu_custom_call.1} parent=31 // pred_check_branch
          %254 = sbr.rel (%p252) target = $region40
        $region39: #{tpu_custom_call.1} parent=31 // pred_region
          %s256 = ssub.s32 512, 512
          %257 = vsyncadd %s248, %s256
          %s258 = smul.addr %s20, 2
          %s259 = smul.addr %s258, 128
          %s260 = scalar_lea.hbm %s3, %s259
          %s261 = sshll.u32 %s251, 4
          %s262 = int_to_ptr.vmem [resolvable:$true] %s261
          %267 = dma.vmem_to_hbm [thread:$0]  %s262, 512, %s260, %s248, 256, 512, 16
        $region40: #{tpu_custom_call.1} parent=31 // pred_fallthru
          _
      $region32: #{tpu_custom_call.1} parent=5 // pred_fallthru
        _
      %p268 = scmp.le.s32.totalorder 2, %s15
      // Predicated region
      $region41: #{tpu_custom_call.1} parent=5 // pred_check
        %p269 = pneg %p268
      $region42: #{tpu_custom_call.1} parent=5 // pred_check_branch
        %271 = sbr.rel (%p269) target = $region44
      $region43: #{tpu_custom_call.1} parent=5 // pred_region
        %s272 = ssub.s32 %s15, 2
        // Predicated region
        $region45: #{tpu_custom_call.1} parent=43 // pred_check
          %p273 = pneg %p112
        $region46: #{tpu_custom_call.1} parent=43 // pred_check_branch
          %275 = sbr.rel (%p273) target = $region48
        $region47: #{tpu_custom_call.1} parent=43 // pred_region
          %s276 = sand.u32 %s97, 1
          %s277 = scalar_lea.sflag [#allocation4], %s276
          %s278 = sand.u32 %s97, 1
          %s279 = smul.addr %s278, 32
          %s280 = scalar_lea.vmem [#allocation5], %s279
          %281 = dma.done %s277, 512
        $region48: #{tpu_custom_call.1} parent=43 // pred_fallthru
          _
      $region44: #{tpu_custom_call.1} parent=5 // pred_fallthru
        _
    $region6: #{tpu_custom_call.1} parent=1 // loop_footer
      %s19 = sadd.s32 1, %s15
    $region7: #{tpu_custom_call.1} parent=1 // loop_footer_branch
      %14 = sbr.rel target = $region3
    $region8: #{tpu_custom_call.1} parent=1 // loop_exit
      _
    %282 = vsyncpa [#allocation3], 1
    %s283 = scalar_lea.sflag [#allocation3], 1
    %284 = vsyncpa %s283, 1
    %285 = vsyncpa [#allocation4], 1
    %s286 = scalar_lea.sflag [#allocation4], 1
    %287 = vsyncpa %s286, 1

</llo_original>
